<compile_context>
chip_gen: v5e
topology: v5e:2x2
jax: 0.10.0
libtpu: 0.0.40
codegen_flags: <defaults>
</compile_context>

<pallas_src>
import jax
import jax.numpy as jnp
from jax.experimental import pallas as pl
from jax.experimental.pallas import tpu as pltpu


# Conservative tile budget: double-buffered (in + out) tiles must fit even the
# v5e 16 MiB default scoped VMEM; explicit limit is safe on v7x's 64 MiB part.
_VMEM_TILE_BUDGET = 12 * (1 << 20)
_VMEM_LIMIT_BYTES = 32 * (1 << 20)


def _conv3d_block_dense_kernel(x_ref, w_ref, o_ref):
    # x_ref: (C_in, tl)    channels-first tile of voxels (lane-dense spatial axis)
    # w_ref: (C_out, C_in) fused weight (I + W2) @ W1
    # o_ref: (C_out, tl)
    y = jnp.dot(w_ref[...], x_ref[...], preferred_element_type=jnp.float32)
    o_ref[...] = jnp.maximum(y, 0.0).astype(o_ref.dtype)


def _round_up(v, m):
    return ((v + m - 1) // m) * m


def _pick_lane_tile(dhw, c_in, c_out, itemsize, min_tiles):
    """Largest lane tile (multiple of 128) fitting the VMEM budget.

    If dhw is a multiple of 128, the tile also divides dhw exactly (no padding
    and no post-slice).  min_tiles > 1 keeps >= 2 grid steps so both v7x
    TensorCores get work.  Returns (tile, padded_spatial_extent).
    """
    c_in_pad = _round_up(max(c_in, 1), 8)      # x tile is sublane-padded to 8
    c_out_pad = _round_up(max(c_out, 1), 8)
    per_lane = 2 * (c_in_pad + c_out_pad) * itemsize   # double-buffered in+out
    cap = max(128, (_VMEM_TILE_BUDGET // per_lane) // 128 * 128)

    if dhw % 128 == 0:
        q = dhw // 128
        cap_q = max(1, cap // 128)
        best = 1
        d = 1
        while d * d <= q:
            if q % d == 0:
                for cand in (d, q // d):
                    if cand <= cap_q and q // cand >= min_tiles and cand > best:
                        best = cand
            d += 1
        return best * 128, dhw

    # Ragged spatial extent: fall back to padding the spatial axis only.
    # TODO(synk): could use an in-kernel masked store for the last partial tile
    # to avoid the extra HBM pass of pad + slice.
    dhw_128 = _round_up(dhw, 128)
    tl = min(cap, dhw_128)
    return tl, _round_up(dhw, tl)


def conv3d_block_dense(x_ncdhw, w1, w2):
    """Forward pass of Conv3dBlock_dense.

    x_ncdhw: (N, C_in, D, H, W)
    w1:      (C_out, C_in, 1, 1, 1)   PyTorch Conv3d weight layout
    w2:      (C_out, C_out, 1, 1, 1)
    returns: (N, C_out, D, H, W)
    """
    N, C_in, D, H, W = x_ncdhw.shape
    C_out = w1.shape[0]
    DHW = D * H * W
    dtype = x_ncdhw.dtype
    itemsize = jnp.dtype(dtype).itemsize

    # Fuse the two 1x1x1 convs: relu(x1 + W2@x1) = relu((I + W2) @ W1 @ x).
    w1m = w1.reshape(C_out, C_in).astype(jnp.float32)
    w2m = w2.reshape(C_out, C_out).astype(jnp.float32)
    w_fused = ((jnp.eye(C_out, dtype=jnp.float32) + w2m) @ w1m).astype(dtype)

    # Keep >= 2 grid steps when the batch axis alone can't feed both v7x cores.
    min_tiles = 2 if (N == 1 and DHW >= 256) else 1
    tl_eff, DHW_pad = _pick_lane_tile(DHW, C_in, C_out, itemsize, min_tiles)

    # NCDHW is already channels-first per voxel: pure reshape, no copy.
    x_flat = x_ncdhw.reshape(N, C_in, DHW)
    if DHW_pad != DHW:
        x_flat = jnp.pad(x_flat, ((0, 0), (0, 0), (0, DHW_pad - DHW)))

    grid = (N, DHW_pad // tl_eff)

    cost = pl.CostEstimate(
        flops=2 * N * C_out * C_in * DHW,
        bytes_accessed=(N * C_in * DHW + N * C_out * DHW + C_out * C_in) * itemsize,
        transcendentals=0,
    )

    out_flat = pl.pallas_call(
        _conv3d_block_dense_kernel,
        out_shape=jax.ShapeDtypeStruct((N, C_out, DHW_pad), dtype),
        grid_spec=pltpu.PrefetchScalarGridSpec(
            num_scalar_prefetch=0,
            grid=grid,
            in_specs=[
                # Batch dim squeezed out of the kernel view.
                pl.BlockSpec((None, C_in, tl_eff), lambda n, s: (n, 0, s)),
                pl.BlockSpec((C_out, C_in), lambda n, s: (0, 0)),
            ],
            out_specs=pl.BlockSpec((None, C_out, tl_eff), lambda n, s: (n, 0, s)),
        ),
        compiler_params=pltpu.CompilerParams(
            dimension_semantics=("parallel", "parallel"),
            vmem_limit_bytes=_VMEM_LIMIT_BYTES,
        ),
        cost_estimate=cost,
    )(x_flat, w_fused)

    if DHW_pad != DHW:
        out_flat = out_flat[:, :, :DHW]
    # (N, C_out, DHW) -> NCDHW: pure reshape, no transpose.
    return out_flat.reshape(N, C_out, D, H, W)


def _reference(x, w1, w2):
    # Pure-JAX reference of the original (unfused) math.
    N, C_in, D, H, W = x.shape
    C_out = w1.shape[0]
    w1m = w1.reshape(C_out, C_in)
    w2m = w2.reshape(C_out, C_out)
    xf = x.reshape(N, C_in, -1)
    x1 = jnp.einsum('oc,ncs->nos', w1m, xf)
    x2 = jnp.einsum('po,nos->nps', w2m, x1)
    out = jnp.maximum(x1 + x2, 0.0)
    return out.reshape(N, C_out, D, H, W)


if __name__ == "__main__":
    # Small shapes consistent with the module: batch=2, in_plane=4,
    # out_plane=8, spatial volume 8x8x8 (DHW = 512, multiple of 128 -> no pad).
    N, C_in, C_out, D, H, W = 2, 4, 8, 8, 8, 8

    key = jax.random.PRNGKey(0)
    kx, k1, k2 = jax.random.split(key, 3)

    x = jax.random.normal(kx, (N, C_in, D, H, W), dtype=jnp.float32)
    # Deterministic synthetic "kaiming-ish" weights (no checkpoint).
    w1 = jax.random.normal(k1, (C_out, C_in, 1, 1, 1), dtype=jnp.float32) * (1.0 / C_in) ** 0.5
    w2 = jax.random.normal(k2, (C_out, C_out, 1, 1, 1), dtype=jnp.float32) * (1.0 / C_out) ** 0.5

    fwd = jax.jit(conv3d_block_dense)   # weight fusion runs inside the jit
    out = jax.block_until_ready(fwd(x, w1, w2))

    ref = _reference(x, w1, w2)
    assert out.shape == (N, C_out, D, H, W)
    # Weight fusion changes f32 rounding slightly; keep a small tolerance.
    assert jnp.allclose(out, ref, atol=1e-4, rtol=1e-4)

    print("KERNEL_OK")
</pallas_src>

<mosaic_0001>
module attributes {stable_mosaic.version = 11 : i64} {
  func.func @_conv3d_block_dense_kernel(%arg0: i32, %arg1: i32, %arg2: memref<1x4x512xf32, #tpu.memory_space<vmem>>, %arg3: memref<8x4xf32, #tpu.memory_space<vmem>>, %arg4: memref<1x8x512xf32, #tpu.memory_space<vmem>>) attributes {dimension_semantics = [#tpu.dimension_semantics<parallel>, #tpu.dimension_semantics<parallel>], iteration_bounds = array<i64: 2, 1>, scalar_prefetch = 0 : i64, scratch_operands = 0 : i64, tpu.core_type = #tpu.core_type<tc>, window_params = [{transform_indices = @transform_0, window_bounds = array<i64: 1, 4, 512>}, {pipeline_mode = #tpu.pipeline_mode<synchronous>, transform_indices = @transform_1, window_bounds = array<i64: 8, 4>}, {transform_indices = @transform_2, window_bounds = array<i64: 1, 8, 512>}]} {
    %c0 = arith.constant 0 : index
    %c0_0 = arith.constant 0 : index
    %0 = vector.load %arg3[%c0, %c0_0] : memref<8x4xf32, #tpu.memory_space<vmem>>, vector<8x4xf32>
    %c0_1 = arith.constant 0 : index
    %c0_2 = arith.constant 0 : index
    %c0_3 = arith.constant 0 : index
    %1 = vector.load %arg2[%c0_1, %c0_2, %c0_3] : memref<1x4x512xf32, #tpu.memory_space<vmem>>, vector<1x4x512xf32>
    %2 = vector.shape_cast %1 : vector<1x4x512xf32> to vector<4x512xf32>
    %cst = arith.constant dense<0.000000e+00> : vector<8x512xf32>
    %3 = tpu.matmul %0, %2, %cst {dimension_numbers = #tpu.dot_dimension_numbers<[1], [0], [0], [1], [0, 0, 1, 1], [], []>} : vector<8x4xf32>, vector<4x512xf32>, vector<8x512xf32> -> vector<8x512xf32>
    %cst_4 = arith.constant 0.000000e+00 : f32
    %4 = vector.broadcast %cst_4 : f32 to vector<8x512xf32>
    %5 = arith.maximumf %3, %4 : vector<8x512xf32>
    %c0_5 = arith.constant 0 : index
    %c0_6 = arith.constant 0 : index
    %c0_7 = arith.constant 0 : index
    %6 = vector.load %arg4[%c0_5, %c0_6, %c0_7] : memref<1x8x512xf32, #tpu.memory_space<vmem>>, vector<1x8x512xf32>
    %7 = vector.shape_cast %6 : vector<1x8x512xf32> to vector<8x512xf32>
    %8 = vector.shape_cast %5 : vector<8x512xf32> to vector<1x8x512xf32>
    tpu.vector_store %arg4[%c0_5, %c0_6, %c0_7], %8 {strides = array<i32>} : memref<1x8x512xf32, #tpu.memory_space<vmem>>, vector<1x8x512xf32>,
    return
  }
  func.func @transform_0(%arg0: i32, %arg1: i32) -> (i32, i32, i32) {
    %c0_i32 = arith.constant 0 : i32
    %c0_i32_0 = arith.constant 0 : i32
    return %arg0, %c0_i32, %arg1 : i32, i32, i32
  }
  func.func @transform_1(%arg0: i32, %arg1: i32) -> (i32, i32) {
    %c0_i32 = arith.constant 0 : i32
    %c0_i32_0 = arith.constant 0 : i32
    %c0_i32_1 = arith.constant 0 : i32
    return %c0_i32, %c0_i32_0 : i32, i32
  }
  func.func @transform_2(%arg0: i32, %arg1: i32) -> (i32, i32, i32) {
    %c0_i32 = arith.constant 0 : i32
    %c0_i32_0 = arith.constant 0 : i32
    return %arg0, %c0_i32, %arg1 : i32, i32, i32
  }
}

</mosaic_0001>

<llo_original>
// kernel: conv3d_block_dense.1
$region0: #{conv3d_block_dense.1}
  #allocation0 [shape = 'u32[]', space=smem, size = 0x4, offset = 0x4, fixed_abs, tag = 'smem constant byte address 0x4 - core index']
  #allocation1 [shape = 'u32[72,128]{1,0:T(1,128)}', space=vmem, size = 0x9000, scoped, tag = 'internal scratch']
  %s0 = inlined_call_operand.vmem [shape: f32[2,4,512], index: 0, kind: input, shape index: {}]
  %s1 = inlined_call_operand.vmem [shape: f32[8,4], index: 1, kind: input, shape index: {}]
  %s2 = inlined_call_operand.vmem [shape: f32[2,8,512], index: 2, kind: output, shape index: {}]
  %s3 = sld [smem:[#allocation0]]
  $region41: #{conv3d_block_dense.1} parent=0
    _
  %s5 = ssub.s32 1, %s3
  %s6 = scalar_select 0, %s5, %s3
  loop: start=0, step=1, limit=4
  $region2: #{conv3d_block_dense.1} parent=0 // loop_pre_header
    _
  $region3: #{conv3d_block_dense.1} parent=0 // loop_header
    %s8 = sphi 0, %s12
    %p9 = scmp.ge.s32.totalorder %s8, 4
    %s15 = sphi 0, %s27
    %s16 = sphi 0, %s23
    %s17 = sphi 0, %s15
    %s18 = sphi 0, %s16
    %s19 = sphi 0, %s17
    %s20 = sphi 0, %s18
    %s32 = sphi 0, %s34
    %s35 = sphi 0, %s32
    %s36 = sphi 0, %s35
    %s52 = sphi 0, %s36
    %s56 = sphi 0, %s56
    %s58 = sphi 0, %s56
    %s59 = sphi 0, %s58
    %s73 = sphi 0, %s59
    %s81 = sphi 0, %s83
    %s84 = sphi 0, %s81
    %s85 = sphi 0, %s84
    %s101 = sphi 0, %s85
  $region4: #{conv3d_block_dense.1} parent=0 // loop_header_branch
    %11 = sbr.rel (%p9) target = $region8
  $region5: #{conv3d_block_dense.1} parent=0 // loop_body
    %s13 = ssub.s32 %s8, 1
    %s14 = ssub.s32 %s8, 2
    %s21 = sadd.s32 1, %s16
    %p22 = scmp.ge.s32.totalorder %s21, 1
    %s23 = scalar_select %p22, 0, %s21
    %s24 = sadd.s32 1, %s15
    %s25 = scalar_select %p22, %s24, %s15
    %p26 = scmp.ge.s32.totalorder %s25, 2
    %s27 = scalar_select %p26, 0, %s25
    %s28 = ssub.s32 %s15, %s27
    %s29 = ssub.s32 %s16, %s23
    %s30 = sor.u32 %s28, %s29
    %p31 = scmp.eq.s32.totalorder %s30, 0
    %s33 = sadd.s32 %s32, 1
    %s34 = scalar_select %p31, %s32, %s33
    %p37 = pneg %p31
    %p38 = scmp.eq.s32.totalorder %s8, 1
    %p39 = por %p37, %p38
    %p40 = scmp.ne.s32.totalorder %s32, %s35
    %p41 = scmp.eq.s32.totalorder %s8, 0
    %p42 = por %p40, %p41
    %p43 = scmp.ne.s32.totalorder %s32, %s35
    %p44 = scmp.eq.s32.totalorder %s13, 1
    %p45 = por %p43, %p44
    %p46 = scmp.ne.s32.totalorder %s35, %s36
    %p47 = scmp.eq.s32.totalorder %s13, 0
    %p48 = por %p46, %p47
    %p49 = scmp.ne.s32.totalorder %s35, %s36
    %p50 = scmp.eq.s32.totalorder %s14, 1
    %p51 = por %p49, %p50
    %p53 = scmp.ne.s32.totalorder %s36, %s52
    %p54 = scmp.eq.s32.totalorder %s14, 0
    %p55 = por %p53, %p54
    %s57 = sadd.s32 %s56, 1
    %p60 = scmp.eq.s32.totalorder %s8, 1
    %p61 = scmp.ne.s32.totalorder %s56, %s58
    %p62 = scmp.eq.s32.totalorder %s8, 0
    %p63 = por %p61, %p62
    %p64 = scmp.ne.s32.totalorder %s56, %s58
    %p65 = scmp.eq.s32.totalorder %s13, 1
    %p66 = por %p64, %p65
    %p67 = scmp.ne.s32.totalorder %s58, %s59
    %p68 = scmp.eq.s32.totalorder %s13, 0
    %p69 = por %p67, %p68
    %p70 = scmp.ne.s32.totalorder %s58, %s59
    %p71 = scmp.eq.s32.totalorder %s14, 1
    %p72 = por %p70, %p71
    %p74 = scmp.ne.s32.totalorder %s59, %s73
    %p75 = scmp.eq.s32.totalorder %s14, 0
    %p76 = por %p74, %p75
    %s77 = ssub.s32 %s15, %s27
    %s78 = ssub.s32 %s16, %s23
    %s79 = sor.u32 %s77, %s78
    %p80 = scmp.eq.s32.totalorder %s79, 0
    %s82 = sadd.s32 %s81, 1
    %s83 = scalar_select %p80, %s81, %s82
    %p86 = pneg %p80
    %p87 = scmp.eq.s32.totalorder %s8, 1
    %p88 = por %p86, %p87
    %p89 = scmp.ne.s32.totalorder %s81, %s84
    %p90 = scmp.eq.s32.totalorder %s8, 0
    %p91 = por %p89, %p90
    %p92 = scmp.ne.s32.totalorder %s81, %s84
    %p93 = scmp.eq.s32.totalorder %s13, 1
    %p94 = por %p92, %p93
    %p95 = scmp.ne.s32.totalorder %s84, %s85
    %p96 = scmp.eq.s32.totalorder %s13, 0
    %p97 = por %p95, %p96
    %p98 = scmp.ne.s32.totalorder %s84, %s85
    %p99 = scmp.eq.s32.totalorder %s14, 1
    %p100 = por %p98, %p99
    %p102 = scmp.ne.s32.totalorder %s85, %s101
    %p103 = scmp.eq.s32.totalorder %s14, 0
    %p104 = por %p102, %p103
    %p105 = scmp.le.s32.totalorder 1, %s8
    %p106 = scmp.lt.s32.totalorder %s8, 3
    %p107 = pnand %p105, %p106
    %p108 = pneg %p107
    // Predicated region
    $region9: #{conv3d_block_dense.1} parent=5 // pred_check
      _
    $region10: #{conv3d_block_dense.1} parent=5 // pred_check_branch
      %110 = sbr.rel (%p107) target = $region12
    $region11: #{conv3d_block_dense.1} parent=5 // pred_region
      %s111 = ssub.s32 %s8, 1
      // Predicated region
      $region13: #{conv3d_block_dense.1} parent=11 // pred_check
        %p112 = pneg %p69
      $region14: #{conv3d_block_dense.1} parent=11 // pred_check_branch
        %114 = sbr.rel (%p112) target = $region16
      $region15: #{conv3d_block_dense.1} parent=11 // pred_region
        _
      $region16: #{conv3d_block_dense.1} parent=11 // pred_fallthru
        _
    $region12: #{conv3d_block_dense.1} parent=5 // pred_fallthru
      _
    %p115 = scmp.lt.s32.totalorder %s8, 2
    // Predicated region
    $region17: #{conv3d_block_dense.1} parent=5 // pred_check
      %p116 = pneg %p115
    $region18: #{conv3d_block_dense.1} parent=5 // pred_check_branch
      %118 = sbr.rel (%p116) target = $region20
    $region19: #{conv3d_block_dense.1} parent=5 // pred_region
      // Predicated region
      $region21: #{conv3d_block_dense.1} parent=19 // pred_check
        %p119 = pneg %p42
      $region22: #{conv3d_block_dense.1} parent=19 // pred_check_branch
        %121 = sbr.rel (%p119) target = $region24
      $region23: #{conv3d_block_dense.1} parent=19 // pred_region
        %s122 = smul.u32 4, %s16
        %p123 = scmp.lt.s32.totalorder %s15, 1
        %s124 = scalar_select %p123, %s15, 1
        %p125 = scmp.lt.s32.totalorder %s122, 3
        %s126 = scalar_select %p125, %s122, 3
        %s127 = smul.addr %s124, 4
        %s128 = sadd.s32 %s126, %s127
        %s129 = smul.addr %s128, 4
        %s130 = scalar_lea.vmem %s0, %s129
        %s131 = smul.u32 4, %s16
      $region24: #{conv3d_block_dense.1} parent=19 // pred_fallthru
        _
    $region20: #{conv3d_block_dense.1} parent=5 // pred_fallthru
      _
    %p132 = scmp.le.s32.totalorder 1, %s8
    %p133 = scmp.lt.s32.totalorder %s8, 3
    %p134 = pnand %p132, %p133
    %p135 = pneg %p134
    // Predicated region
    $region25: #{conv3d_block_dense.1} parent=5 // pred_check
      _
    $region26: #{conv3d_block_dense.1} parent=5 // pred_check_branch
      %137 = sbr.rel (%p134) target = $region28
    $region27: #{conv3d_block_dense.1} parent=5 // pred_region
      %s138 = ssub.s32 %s8, 1
      %s139 = smul.u32 4, %s18
      %p140 = scmp.lt.s32.totalorder %s17, 1
      %s141 = scalar_select %p140, %s17, 1
      %p142 = scmp.lt.s32.totalorder %s139, 3
      %s143 = scalar_select %p142, %s139, 3
      %s144 = smul.addr %s141, 4
      %s145 = sadd.s32 %s143, %s144
      %s146 = smul.addr %s145, 4
      %s147 = scalar_lea.vmem %s0, %s146
      %p148 = pneg %p48
      %p149 = pneg %p45
      %p150 = pneg %p69
      %p151 = pneg %p66
      %p152 = pneg %p97
      %p153 = pneg %p94
      %s154 = smul.u32 4, %s18
      %p155 = scmp.lt.s32.totalorder %s17, 1
      %s156 = scalar_select %p155, %s17, 1
      %p157 = scmp.lt.s32.totalorder %s154, 3
      %s158 = scalar_select %p157, %s154, 3
      %s159 = smul.addr %s156, 4
      %s160 = sadd.s32 %s158, %s159
      %s161 = smul.addr %s160, 8
      %s162 = scalar_lea.vmem %s2, %s161
      %s163 = smul.u32 4, %s18
      %p164 = scmp.lt.s32.totalorder %s17, 1
      %s165 = scalar_select %p164, %s17, 1
      %p166 = scmp.lt.s32.totalorder %s163, 3
      %s167 = scalar_select %p166, %s163, 3
      %s168 = smul.addr %s165, 4
      %s169 = sadd.s32 %s167, %s168
      %s170 = smul.addr %s169, 4
      %s171 = scalar_lea.vmem %s0, %s170
      %s172 = smul.u32 4, %s18
      %s173 = smul.u32 4, %s18
      %p174 = scmp.lt.s32.totalorder %s17, 1
      %s175 = scalar_select %p174, %s17, 1
      %p176 = scmp.lt.s32.totalorder %s173, 3
      %s177 = scalar_select %p176, %s173, 3
      %s178 = smul.addr %s175, 4
      %s179 = sadd.s32 %s177, %s178
      %s180 = smul.addr %s179, 8
      %s181 = scalar_lea.vmem %s2, %s180
      %s182 = smul.u32 4, %s18
      %v183 = vld [vmem:[%s1] sm:$0xff]
      %v184 = vld [vmem:[%s171] sm:$0xff]
      %v185 = vld [vmem:[%s171 + $0x8] sm:$0xff]
      %188 = vst [vmem:[#allocation1] ss:$2 sm:$0xff] %v184
      %s189 = scalar_lea.vmem [#allocation1], 16
      %190 = vst [vmem:[%s189] ss:$2 sm:$0xff] %v185
      %v191 = vld.sshfl [vmem:[#allocation1] sm:$0xff pattern:$0x75316420]
      %v192 = vld.sshfl [vmem:[#allocation1 + $0x8] sm:$0xff pattern:$0x75316420]
      %v193 = vld.sshfl [vmem:[#allocation1 + $0x10] sm:$0xff pattern:$0x75316420]
      %v194 = vld.sshfl [vmem:[#allocation1 + $0x18] sm:$0xff pattern:$0x75316420]
      %vm195 = vcmask 31744
      %v197 = vsel %vm195, %v183, 0
      %vm199 = vcmask 1043456
      %v200 = vsel %vm199, %v191, 0
      %v202 = vsel %vm199, %v192, 0
      %v204 = vsel %vm199, %v193, 0
      %v206 = vsel %vm199, %v194, 0
      %208 = vmatpush.msra.mxu0 0.0
      %209 = vmatpush.msra.mxu0 0.0
      %210 = vmatpush.msra.mxu0 0.0
      %211 = vmatpush.msra.mxu0 0.0
      %212 = vmatpush.msra.mxu0 0.0
      %213 = vmatpush.msra.mxu0 0.0
      %214 = vmatpush.msra.mxu0 0.0
      %215 = vmatpush.msra.mxu0 0.0
      %216 = vmatpush.msra.mxu0 0.0
      %217 = vmatpush.msra.mxu0 0.0
      %218 = vmatpush.msra.mxu0 0.0
      %219 = vmatpush.msra.mxu0 0.0
      %220 = vmatpush.msra.mxu0 0.0
      %221 = vmatpush.msra.mxu0 0.0
      %222 = vmatpush.msra.mxu0 0.0
      %223 = vmatpush.msra.mxu0 %v200
      %224 = vmatmul.f32.gmra.mxu0 %v197
      %v225 = vpop.f32.mrf.mxu0
      %v226 = vadd.f32 0.0, %v225
      %227 = vdwg.mxu0
      %228 = vmatpush.msra.mxu0 0.0
      %229 = vmatpush.msra.mxu0 0.0
      %230 = vmatpush.msra.mxu0 0.0
      %231 = vmatpush.msra.mxu0 0.0
      %232 = vmatpush.msra.mxu0 0.0
      %233 = vmatpush.msra.mxu0 0.0
      %234 = vmatpush.msra.mxu0 0.0
      %235 = vmatpush.msra.mxu0 0.0
      %236 = vmatpush.msra.mxu0 0.0
      %237 = vmatpush.msra.mxu0 0.0
      %238 = vmatpush.msra.mxu0 0.0
      %239 = vmatpush.msra.mxu0 0.0
      %240 = vmatpush.msra.mxu0 0.0
      %241 = vmatpush.msra.mxu0 0.0
      %242 = vmatpush.msra.mxu0 0.0
      %243 = vmatpush.msra.mxu0 %v202
      %244 = vmatmul.f32.gmra.mxu0 %v197
      %v245 = vpop.f32.mrf.mxu0
      %v246 = vadd.f32 0.0, %v245
      %247 = vdwg.mxu0
      %248 = vmatpush.msra.mxu0 0.0
      %249 = vmatpush.msra.mxu0 0.0
      %250 = vmatpush.msra.mxu0 0.0
      %251 = vmatpush.msra.mxu0 0.0
      %252 = vmatpush.msra.mxu0 0.0
      %253 = vmatpush.msra.mxu0 0.0
      %254 = vmatpush.msra.mxu0 0.0
      %255 = vmatpush.msra.mxu0 0.0
      %256 = vmatpush.msra.mxu0 0.0
      %257 = vmatpush.msra.mxu0 0.0
      %258 = vmatpush.msra.mxu0 0.0
      %259 = vmatpush.msra.mxu0 0.0
      %260 = vmatpush.msra.mxu0 0.0
      %261 = vmatpush.msra.mxu0 0.0
      %262 = vmatpush.msra.mxu0 0.0
      %263 = vmatpush.msra.mxu0 %v204
      %264 = vmatmul.f32.gmra.mxu0 %v197
      %v265 = vpop.f32.mrf.mxu0
      %v266 = vadd.f32 0.0, %v265
      %267 = vdwg.mxu0
      %268 = vmatpush.msra.mxu0 0.0
      %269 = vmatpush.msra.mxu0 0.0
      %270 = vmatpush.msra.mxu0 0.0
      %271 = vmatpush.msra.mxu0 0.0
      %272 = vmatpush.msra.mxu0 0.0
      %273 = vmatpush.msra.mxu0 0.0
      %274 = vmatpush.msra.mxu0 0.0
      %275 = vmatpush.msra.mxu0 0.0
      %276 = vmatpush.msra.mxu0 0.0
      %277 = vmatpush.msra.mxu0 0.0
      %278 = vmatpush.msra.mxu0 0.0
      %279 = vmatpush.msra.mxu0 0.0
      %280 = vmatpush.msra.mxu0 0.0
      %281 = vmatpush.msra.mxu0 0.0
      %282 = vmatpush.msra.mxu0 0.0
      %283 = vmatpush.msra.mxu0 %v206
      %284 = vmatmul.f32.gmra.mxu0 %v197
      %v285 = vpop.f32.mrf.mxu0
      %v286 = vadd.f32 0.0, %v285
      %287 = vdwg.mxu0
      %v288 = vmax.f32 %v226, 0.0
      %v289 = vmax.f32 %v246, 0.0
      %v290 = vmax.f32 %v266, 0.0
      %v291 = vmax.f32 %v286, 0.0
      %292 = vst [vmem:[%s181] sm:$0xff] %v288
      %293 = vst [vmem:[%s181 + $0x8] sm:$0xff] %v289
      %294 = vst [vmem:[%s181 + $0x10] sm:$0xff] %v290
      %295 = vst [vmem:[%s181 + $0x18] sm:$0xff] %v291
      %s296 = smul.u32 4, %s18
      %p297 = scmp.lt.s32.totalorder %s17, 1
      %s298 = scalar_select %p297, %s17, 1
      %p299 = scmp.lt.s32.totalorder %s296, 3
      %s300 = scalar_select %p299, %s296, 3
      %s301 = smul.addr %s298, 4
      %s302 = sadd.s32 %s300, %s301
      %s303 = smul.addr %s302, 8
      %s304 = scalar_lea.vmem %s2, %s303
      // Predicated region
      $region29: #{conv3d_block_dense.1} parent=27 // pred_check
        %p305 = pneg %p94
      $region30: #{conv3d_block_dense.1} parent=27 // pred_check_branch
        %307 = sbr.rel (%p305) target = $region32
      $region31: #{conv3d_block_dense.1} parent=27 // pred_region
        %s308 = smul.u32 4, %s18
      $region32: #{conv3d_block_dense.1} parent=27 // pred_fallthru
        _
    $region28: #{conv3d_block_dense.1} parent=5 // pred_fallthru
      _
    %p309 = scmp.le.s32.totalorder 2, %s8
    // Predicated region
    $region33: #{conv3d_block_dense.1} parent=5 // pred_check
      %p310 = pneg %p309
    $region34: #{conv3d_block_dense.1} parent=5 // pred_check_branch
      %312 = sbr.rel (%p310) target = $region36
    $region35: #{conv3d_block_dense.1} parent=5 // pred_region
      %s313 = ssub.s32 %s8, 2
      // Predicated region
      $region37: #{conv3d_block_dense.1} parent=35 // pred_check
        %p314 = pneg %p100
      $region38: #{conv3d_block_dense.1} parent=35 // pred_check_branch
        %316 = sbr.rel (%p314) target = $region40
      $region39: #{conv3d_block_dense.1} parent=35 // pred_region
        %s317 = smul.u32 4, %s20
        %p318 = scmp.lt.s32.totalorder %s19, 1
        %s319 = scalar_select %p318, %s19, 1
        %p320 = scmp.lt.s32.totalorder %s317, 3
        %s321 = scalar_select %p320, %s317, 3
        %s322 = smul.addr %s319, 4
        %s323 = sadd.s32 %s321, %s322
        %s324 = smul.addr %s323, 8
        %s325 = scalar_lea.vmem %s2, %s324
      $region40: #{conv3d_block_dense.1} parent=35 // pred_fallthru
        _
    $region36: #{conv3d_block_dense.1} parent=5 // pred_fallthru
      _
  $region6: #{conv3d_block_dense.1} parent=0 // loop_footer
    %s12 = sadd.s32 1, %s8
  $region7: #{conv3d_block_dense.1} parent=0 // loop_footer_branch
    %7 = sbr.rel target = $region3
  $region8: #{conv3d_block_dense.1} parent=0 // loop_exit
    _

</llo_original>
